<compile_context>
chip_gen: v6e
topology: v6e:2x2x1
jax: 0.10.0
libtpu: 0.0.40
codegen_flags: <defaults>
</compile_context>

<pallas_src>
import functools

import jax
import jax.numpy as jnp
from jax.experimental import pallas as pl
from jax.experimental.pallas import tpu as pltpu


# ---------------------------------------------------------------------------
# Kernel 1: matmul + bias + ReLU (single K/N block, M tiled).
# ---------------------------------------------------------------------------
def _matmul_bias_relu_kernel(x_ref, w_ref, b_ref, o_ref):
    y = jnp.dot(x_ref[...], w_ref[...], preferred_element_type=jnp.float32)
    o_ref[...] = jnp.maximum(y + b_ref[...], 0.0).astype(o_ref.dtype)


def matmul_bias_relu(x, w, b, *, tm=8192):
    """relu(x @ w + b); x:(M,K), w:(K,N), b:(N,) -> (M,N) f32.

    The MXU sees bf16 inputs, accumulation is f32.  K and N are single full
    blocks (no zero padding); M is cdiv-tiled and the ragged last block is
    handled by Pallas (its padded rows never touch valid outputs).
    """
    M, K = x.shape
    K2, N = w.shape
    assert K == K2 and b.shape == (N,)
    xb = x.astype(jnp.bfloat16)
    wb = w.astype(jnp.bfloat16)
    b2 = b.astype(jnp.float32).reshape(1, N)
    if M <= tm:
        tm = M                        # single block (full-dim layout exception)
    else:
        tm = max(8, (tm // 8) * 8)    # second-minor block dim must be 8-aligned
    return pl.pallas_call(
        _matmul_bias_relu_kernel,
        out_shape=jax.ShapeDtypeStruct((M, N), jnp.float32),
        grid=(pl.cdiv(M, tm),),
        in_specs=[
            pl.BlockSpec((tm, K), lambda i: (i, 0)),
            pl.BlockSpec((K, N), lambda i: (0, 0)),
            pl.BlockSpec((1, N), lambda i: (0, 0)),
        ],
        out_specs=pl.BlockSpec((tm, N), lambda i: (i, 0)),
        compiler_params=pltpu.CompilerParams(
            dimension_semantics=("parallel",),
            vmem_limit_bytes=48 * 1024 * 1024),
    )(xb, wb, b2)


# ---------------------------------------------------------------------------
# Kernel 2: fused 3x3x3 valid conv + bias + ReLU over one output depth plane.
# The 27 taps are gathered inside the kernel from three consecutive input
# depth planes (no im2col tensor in HBM).
# ---------------------------------------------------------------------------
def _fused_conv3d_kernel(x0_ref, x1_ref, x2_ref, w_ref, b_ref, o_ref, acc_ref,
                         *, width, fp_rows):
    planes = (x0_ref, x1_ref, x2_ref)
    first = True
    for dz in range(3):
        for dy in range(3):
            for dx in range(3):
                off = dy * width + dx                      # static offset
                lhs = planes[dz][0, 0, pl.ds(off, fp_rows), :]
                lhs = lhs.astype(jnp.bfloat16)             # MXU in bf16
                rhs = w_ref[(dz * 3 + dy) * 3 + dx]        # (Cin, Cout) bf16
                part = jnp.dot(lhs, rhs, preferred_element_type=jnp.float32)
                if first:
                    acc_ref[...] = part
                    first = False
                else:
                    acc_ref[...] += part
    o_ref[0, 0] = jnp.maximum(acc_ref[...] + b_ref[0], 0.0)


def conv3d_bias_relu_fused(x, w, b):
    """3x3x3 valid conv + bias + ReLU with the im2col fused into the kernel.

    x: (N, D, H, W, Cin) f32; w: (Cout, Cin, 3, 3, 3); b: (Cout,).
    Grid is (batch, output depth plane); every step reads three consecutive
    input planes (shifted BlockSpecs on the same array) and accumulates the
    27 taps in a VMEM f32 scratch.
    """
    n, d, h, wd, cin = x.shape
    cout = w.shape[0]
    do, wo = d - 2, wd - 2
    hw = h * wd
    fp = (h - 2) * wd - 2          # flat rows computed per output plane
    x2 = x.reshape(n, d, hw, cin)
    wf = jnp.transpose(w, (2, 3, 4, 1, 0)).reshape(27, cin, cout)
    wf = wf.astype(jnp.bfloat16)
    b2 = b.astype(jnp.float32).reshape(1, cout)

    def plane_spec(dz):
        return pl.BlockSpec((1, 1, hw, cin),
                            lambda bi, zi: (bi, zi + dz, 0, 0))

    out = pl.pallas_call(
        functools.partial(_fused_conv3d_kernel, width=wd, fp_rows=fp),
        out_shape=jax.ShapeDtypeStruct((n, do, fp, cout), jnp.float32),
        grid=(n, do),
        in_specs=[plane_spec(0), plane_spec(1), plane_spec(2),
                  pl.BlockSpec((27, cin, cout), lambda bi, zi: (0, 0, 0)),
                  pl.BlockSpec((1, cout), lambda bi, zi: (0, 0))],
        out_specs=pl.BlockSpec((1, 1, fp, cout),
                               lambda bi, zi: (bi, zi, 0, 0)),
        scratch_shapes=[pltpu.VMEM((fp, cout), jnp.float32)],
        compiler_params=pltpu.CompilerParams(
            dimension_semantics=("parallel", "parallel"),
            vmem_limit_bytes=48 * 1024 * 1024),
    )(x2, x2, x2, wf, b2)

    # The kernel works in a flat (h-2)*wd row space minus the last 2 rows
    # (which only hold invalid column positions).  Pad them back, fold to
    # (h-2, wd) and drop the two invalid columns.
    out = jnp.pad(out, ((0, 0), (0, 0), (0, (h - 2) * wd - fp), (0, 0)))
    out = out.reshape(n, do, h - 2, wd, cout)[:, :, :, :wo, :]
    return out


# ---------------------------------------------------------------------------
# Kernel 3: MaxPool3d(kernel=2, stride=2, padding=1) = 8-way elementwise max.
# ---------------------------------------------------------------------------
def _max8_kernel(*refs):
    o_ref = refs[-1]
    m = refs[0][...]
    for r in refs[1:-1]:
        m = jnp.maximum(m, r[...])
    o_ref[...] = m


def maxpool3d_k2s2p1(x, *, tm=1024):
    """PyTorch nn.MaxPool3d(kernel_size=2, stride=2, padding=1) on NDHWC."""
    n, d, h, w, c = x.shape
    assert d % 2 == 0 and h % 2 == 0 and w % 2 == 0   # always true in this net
    neg = jnp.finfo(x.dtype).min
    xp = jnp.pad(x, ((0, 0), (1, 1), (1, 1), (1, 1), (0, 0)),
                 constant_values=neg)
    do, ho, wo = d // 2 + 1, h // 2 + 1, w // 2 + 1
    M = n * do * ho * wo
    # Lane-dense layout: fold channels (and neighbouring voxels when c < 128)
    # into 128-wide rows so stores are full vector stores.
    if (M * c) % 128 == 0:
        rows, cols = (M * c) // 128, 128
    else:
        rows, cols = M, c
    corners = [xp[:, dz::2, dy::2, dx::2, :].reshape(rows, cols)
               for dz in range(2) for dy in range(2) for dx in range(2)]
    tr = rows if rows <= tm else tm
    spec = pl.BlockSpec((tr, cols), lambda i: (i, 0))
    out = pl.pallas_call(
        _max8_kernel,
        out_shape=jax.ShapeDtypeStruct((rows, cols), x.dtype),
        grid=(pl.cdiv(rows, tr),),
        in_specs=[spec] * 8,
        out_specs=spec,
        compiler_params=pltpu.CompilerParams(
            dimension_semantics=("parallel",)),
    )(*corners)
    return out.reshape(n, do, ho, wo, c)


# ---------------------------------------------------------------------------
# Conv3d via im2col + one matmul pallas_call (used where the patch tensor is
# small: conv1 with Cin=1 and the tiny-spatial conv5..conv8).
# ---------------------------------------------------------------------------
def conv3d_bias_relu_im2col(x, w, b, *, tm=8192):
    n, d, h, wd, cin = x.shape
    cout = w.shape[0]
    do, ho, wo = d - 2, h - 2, wd - 2
    xb = x.astype(jnp.bfloat16)
    slabs = [xb[:, dz:dz + do, dy:dy + ho, dx:dx + wo, :]
             for dz in range(3) for dy in range(3) for dx in range(3)]
    patches = jnp.stack(slabs, axis=4).reshape(n * do * ho * wo, 27 * cin)
    w2 = jnp.transpose(w, (2, 3, 4, 1, 0)).reshape(27 * cin, cout)
    y = matmul_bias_relu(patches, w2, b, tm=tm)
    return y.reshape(n, do, ho, wo, cout)


# ---------------------------------------------------------------------------
# Match3DNet model
# ---------------------------------------------------------------------------
_CONV_CHANNELS = [(1, 64), (64, 64), (64, 128), (128, 128),
                  (128, 256), (256, 256), (256, 512), (512, 512)]
_POOL_AFTER = {1, 3}        # MaxPool3d after conv indices 1 and 3 (0-based)
_FUSED_LAYERS = {1, 2, 3}   # HBM-heavy layers -> fused (in-kernel im2col) path


def init_params(key):
    params = []
    for cin, cout in _CONV_CHANNELS:
        key, wk = jax.random.split(key)
        fan_in = cin * 27
        wgt = jax.random.normal(wk, (cout, cin, 3, 3, 3), jnp.float32)
        wgt = wgt * (2.0 / fan_in) ** 0.5            # deterministic He init
        bias = jnp.zeros((cout,), jnp.float32)
        params.append((wgt, bias))
    return params


def forward_once(params, x):
    # x: (N, 1, D, D, D) PyTorch NCDHW -> NDHWC
    x = jnp.transpose(x, (0, 2, 3, 4, 1)).astype(jnp.float32)
    for i, (wgt, bias) in enumerate(params):
        if i in _FUSED_LAYERS:
            x = conv3d_bias_relu_fused(x, wgt, bias)
        else:
            x = conv3d_bias_relu_im2col(x, wgt, bias)
        if i in _POOL_AFTER:
            x = maxpool3d_k2s2p1(x)
    return x.reshape(x.shape[0], 512)                # == x.view(x.size(0), 512)


def match3dnet_forward(params, p1, p2, p3):
    # Siamese: all three branches share weights; batch them through one pass.
    n = p1.shape[0]
    feats = forward_once(params, jnp.concatenate([p1, p2, p3], axis=0))
    return feats[:n], feats[n:2 * n], feats[2 * n:]


# ---------------------------------------------------------------------------
# Cheap per-kernel correctness checks on tiny shapes (replaces the previous
# full-model XLA reference, which was too slow for the interpret harness).
# ---------------------------------------------------------------------------
def _conv_reference(x, w, b):
    # Pure-jnp 3x3x3 valid conv with bf16-rounded inputs, f32 accumulation.
    n, d, h, wd, cin = x.shape
    cout = w.shape[0]
    do, ho, wo = d - 2, h - 2, wd - 2
    xb = x.astype(jnp.bfloat16).astype(jnp.float32)
    wb = w.astype(jnp.bfloat16).astype(jnp.float32)
    acc = jnp.zeros((n, do, ho, wo, cout), jnp.float32)
    for dz in range(3):
        for dy in range(3):
            for dx in range(3):
                win = xb[:, dz:dz + do, dy:dy + ho, dx:dx + wo, :]
                acc = acc + jnp.einsum('ndhwc,oc->ndhwo', win,
                                       wb[:, :, dz, dy, dx])
    return jnp.maximum(acc + b, 0.0)


def _unit_checks():
    key = jax.random.PRNGKey(1)
    k1, k2, k3, k4, k5 = jax.random.split(key, 5)

    # Matmul + bias + ReLU kernel (exercises the ragged last M block).
    xm = jax.random.normal(k1, (100, 48), jnp.float32)
    wm = jax.random.normal(k2, (48, 72), jnp.float32)
    bm = jax.random.normal(k3, (72,), jnp.float32)
    got = matmul_bias_relu(xm, wm, bm, tm=64)
    ref = jnp.maximum(
        xm.astype(jnp.bfloat16).astype(jnp.float32)
        @ wm.astype(jnp.bfloat16).astype(jnp.float32) + bm, 0.0)
    assert jnp.allclose(got, ref, rtol=2e-2, atol=2e-2), "matmul kernel mismatch"

    # Both conv paths vs. a dense reference on a tiny problem.
    xc = jax.random.normal(k4, (1, 5, 7, 9, 8), jnp.float32)
    wc = jax.random.normal(k5, (16, 8, 3, 3, 3), jnp.float32) * 0.2
    bc = jnp.linspace(-0.5, 0.5, 16, dtype=jnp.float32)
    refc = _conv_reference(xc, wc, bc)
    got_a = conv3d_bias_relu_im2col(xc, wc, bc, tm=64)
    got_b = conv3d_bias_relu_fused(xc, wc, bc)
    assert jnp.allclose(got_a, refc, rtol=3e-2, atol=3e-2), "im2col conv mismatch"
    assert jnp.allclose(got_b, refc, rtol=3e-2, atol=3e-2), "fused conv mismatch"

    # MaxPool kernel vs. reduce_window.
    xpool = jax.random.normal(k1, (1, 4, 4, 6, 64), jnp.float32)
    gotp = maxpool3d_k2s2p1(xpool)
    refp = jax.lax.reduce_window(
        xpool, -jnp.inf, jax.lax.max,
        window_dimensions=(1, 2, 2, 2, 1), window_strides=(1, 2, 2, 2, 1),
        padding=((0, 0), (1, 1), (1, 1), (1, 1), (0, 0)))
    assert jnp.allclose(gotp, refp), "maxpool kernel mismatch"


if __name__ == "__main__":
    _unit_checks()

    key = jax.random.PRNGKey(0)
    kp, k1, k2, k3 = jax.random.split(key, 4)
    params = init_params(kp)

    # Smallest input spatial size for which the trailing `.view(N, 512)` is
    # valid: 42 -> 40 -> 38 -> pool 20 -> 18 -> 16 -> pool 9 -> 7 -> 5 -> 3 -> 1.
    S = 42
    p1 = jax.random.normal(k1, (1, 1, S, S, S), jnp.float32)
    p2 = jax.random.normal(k2, (1, 1, S, S, S), jnp.float32)
    p3 = jax.random.normal(k3, (1, 1, S, S, S), jnp.float32)

    fwd = jax.jit(match3dnet_forward)
    f1, f2, f3 = jax.block_until_ready(fwd(params, p1, p2, p3))

    assert f1.shape == (1, 512) and f2.shape == (1, 512) and f3.shape == (1, 512)
    assert bool(jnp.all(jnp.isfinite(f1)) & jnp.all(jnp.isfinite(f2))
                & jnp.all(jnp.isfinite(f3)))
    print("KERNEL_OK")
</pallas_src>

<mosaic_0001>
module attributes {stable_mosaic.version = 11 : i64} {
  func.func @_matmul_bias_relu_kernel(%arg0: i32, %arg1: memref<64x48xbf16, #tpu.memory_space<vmem>>, %arg2: memref<48x72xbf16, #tpu.memory_space<vmem>>, %arg3: memref<1x72xf32, #tpu.memory_space<vmem>>, %arg4: memref<64x72xf32, #tpu.memory_space<vmem>>) attributes {dimension_semantics = [#tpu.dimension_semantics<parallel>], iteration_bounds = array<i64: 2>, scalar_prefetch = 0 : i64, scratch_operands = 0 : i64, tpu.core_type = #tpu.core_type<tc>, window_params = [{transform_indices = @transform_0, window_bounds = array<i64: 64, 48>}, {pipeline_mode = #tpu.pipeline_mode<synchronous>, transform_indices = @transform_1, window_bounds = array<i64: 48, 72>}, {pipeline_mode = #tpu.pipeline_mode<synchronous>, transform_indices = @transform_2, window_bounds = array<i64: 1, 72>}, {transform_indices = @transform_3, window_bounds = array<i64: 64, 72>}]} {
    %c0 = arith.constant 0 : index
    %c0_0 = arith.constant 0 : index
    %0 = vector.load %arg1[%c0, %c0_0] : memref<64x48xbf16, #tpu.memory_space<vmem>>, vector<64x48xbf16>
    %c0_1 = arith.constant 0 : index
    %c0_2 = arith.constant 0 : index
    %1 = vector.load %arg2[%c0_1, %c0_2] : memref<48x72xbf16, #tpu.memory_space<vmem>>, vector<48x72xbf16>
    %cst = arith.constant dense<0.000000e+00> : vector<64x72xf32>
    %2 = tpu.matmul %0, %1, %cst {dimension_numbers = #tpu.dot_dimension_numbers<[1], [0], [0], [1], [0, 0, 1, 1], [], []>} : vector<64x48xbf16>, vector<48x72xbf16>, vector<64x72xf32> -> vector<64x72xf32>
    %c0_3 = arith.constant 0 : index
    %c0_4 = arith.constant 0 : index
    %3 = vector.load %arg3[%c0_3, %c0_4] : memref<1x72xf32, #tpu.memory_space<vmem>>, vector<1x72xf32>
    %4 = vector.broadcast %3 : vector<1x72xf32> to vector<64x72xf32>
    %5 = arith.addf %2, %4 : vector<64x72xf32>
    %cst_5 = arith.constant 0.000000e+00 : f32
    %6 = vector.broadcast %cst_5 : f32 to vector<64x72xf32>
    %7 = arith.maximumf %5, %6 : vector<64x72xf32>
    %c0_6 = arith.constant 0 : index
    %c0_7 = arith.constant 0 : index
    %8 = vector.load %arg4[%c0_6, %c0_7] : memref<64x72xf32, #tpu.memory_space<vmem>>, vector<64x72xf32>
    tpu.vector_store %arg4[%c0_6, %c0_7], %7 {strides = array<i32>} : memref<64x72xf32, #tpu.memory_space<vmem>>, vector<64x72xf32>,
    return
  }
  func.func @transform_0(%arg0: i32) -> (i32, i32) {
    %c0_i32 = arith.constant 0 : i32
    %c0_i32_0 = arith.constant 0 : i32
    return %arg0, %c0_i32 : i32, i32
  }
  func.func @transform_1(%arg0: i32) -> (i32, i32) {
    %c0_i32 = arith.constant 0 : i32
    %c0_i32_0 = arith.constant 0 : i32
    %c0_i32_1 = arith.constant 0 : i32
    return %c0_i32, %c0_i32_0 : i32, i32
  }
  func.func @transform_2(%arg0: i32) -> (i32, i32) {
    %c0_i32 = arith.constant 0 : i32
    %c0_i32_0 = arith.constant 0 : i32
    %c0_i32_1 = arith.constant 0 : i32
    return %c0_i32, %c0_i32_0 : i32, i32
  }
  func.func @transform_3(%arg0: i32) -> (i32, i32) {
    %c0_i32 = arith.constant 0 : i32
    %c0_i32_0 = arith.constant 0 : i32
    return %arg0, %c0_i32 : i32, i32
  }
}

</mosaic_0001>

<llo_original>
// kernel: tpu_custom_call.1
$region0: #{tpu_custom_call.1}
  #allocation0 [shape = 'u32[]', space=smem, size = 0x4, offset = 0x4, fixed_abs, tag = 'smem constant byte address 0x4 - core index']
  #allocation1 [shape = 'u32[144,128]{1,0:T(1,128)}', space=vmem, size = 0x12000, scoped, tag = 'internal scratch']
  %s0 = inlined_call_operand.vmem [shape: bf16[100,48], index: 0, kind: input, shape index: {}]
  %s1 = inlined_call_operand.vmem [shape: bf16[48,72], index: 1, kind: input, shape index: {}]
  %s2 = inlined_call_operand.vmem [shape: f32[1,72], index: 2, kind: input, shape index: {}]
  %s3 = inlined_call_operand.vmem [shape: f32[100,72], index: 3, kind: output, shape index: {}]
  %s4 = sld [smem:[#allocation0]]
  $region93: #{tpu_custom_call.1} parent=0
    _
  %s6 = ssub.s32 1, %s4
  %s7 = scalar_select 0, %s6, %s4
  $region1: #{tpu_custom_call.1} parent=0
    #allocation2 [shape = 'u8[65536]{0}', space=vmem, size = 0x10000, scoped, tag = 'output window, operand 0']
    loop: start=0, step=1, limit=4
    $region2: #{tpu_custom_call.1} parent=1 // loop_pre_header
      _
    $region3: #{tpu_custom_call.1} parent=1 // loop_header
      %s9 = sphi 0, %s13
      %p10 = scmp.ge.s32.totalorder %s9, 4
      %s19 = sphi 0, %s21
      %s22 = sphi 0, %s19
      %s23 = sphi 0, %s22
      %s39 = sphi 0, %s23
      %s43 = sphi 0, %s43
      %s45 = sphi 0, %s43
      %s46 = sphi 0, %s45
      %s60 = sphi 0, %s46
      %s64 = sphi 0, %s64
      %s66 = sphi 0, %s64
      %s67 = sphi 0, %s66
      %s81 = sphi 0, %s67
      %s87 = sphi 0, %s89
      %s90 = sphi 0, %s87
      %s91 = sphi 0, %s90
      %s107 = sphi 0, %s91
    $region4: #{tpu_custom_call.1} parent=1 // loop_header_branch
      %12 = sbr.rel (%p10) target = $region8
    $region5: #{tpu_custom_call.1} parent=1 // loop_body
      %s14 = ssub.s32 %s9, 1
      %s15 = ssub.s32 %s9, 2
      %s16 = sadd.s32 %s9, 1
      %s17 = ssub.s32 %s9, %s16
      %p18 = scmp.eq.s32.totalorder %s17, 0
      %s20 = sadd.s32 %s19, 1
      %s21 = scalar_select %p18, %s19, %s20
      %p24 = pneg %p18
      %p25 = scmp.eq.s32.totalorder %s9, 1
      %p26 = por %p24, %p25
      %p27 = scmp.ne.s32.totalorder %s19, %s22
      %p28 = scmp.eq.s32.totalorder %s9, 0
      %p29 = por %p27, %p28
      %p30 = scmp.ne.s32.totalorder %s19, %s22
      %p31 = scmp.eq.s32.totalorder %s14, 1
      %p32 = por %p30, %p31
      %p33 = scmp.ne.s32.totalorder %s22, %s23
      %p34 = scmp.eq.s32.totalorder %s14, 0
      %p35 = por %p33, %p34
      %p36 = scmp.ne.s32.totalorder %s22, %s23
      %p37 = scmp.eq.s32.totalorder %s15, 1
      %p38 = por %p36, %p37
      %p40 = scmp.ne.s32.totalorder %s23, %s39
      %p41 = scmp.eq.s32.totalorder %s15, 0
      %p42 = por %p40, %p41
      %s44 = sadd.s32 %s43, 1
      %p47 = scmp.eq.s32.totalorder %s9, 1
      %p48 = scmp.ne.s32.totalorder %s43, %s45
      %p49 = scmp.eq.s32.totalorder %s9, 0
      %p50 = por %p48, %p49
      %p51 = scmp.ne.s32.totalorder %s43, %s45
      %p52 = scmp.eq.s32.totalorder %s14, 1
      %p53 = por %p51, %p52
      %p54 = scmp.ne.s32.totalorder %s45, %s46
      %p55 = scmp.eq.s32.totalorder %s14, 0
      %p56 = por %p54, %p55
      %p57 = scmp.ne.s32.totalorder %s45, %s46
      %p58 = scmp.eq.s32.totalorder %s15, 1
      %p59 = por %p57, %p58
      %p61 = scmp.ne.s32.totalorder %s46, %s60
      %p62 = scmp.eq.s32.totalorder %s15, 0
      %p63 = por %p61, %p62
      %s65 = sadd.s32 %s64, 1
      %p68 = scmp.eq.s32.totalorder %s9, 1
      %p69 = scmp.ne.s32.totalorder %s64, %s66
      %p70 = scmp.eq.s32.totalorder %s9, 0
      %p71 = por %p69, %p70
      %p72 = scmp.ne.s32.totalorder %s64, %s66
      %p73 = scmp.eq.s32.totalorder %s14, 1
      %p74 = por %p72, %p73
      %p75 = scmp.ne.s32.totalorder %s66, %s67
      %p76 = scmp.eq.s32.totalorder %s14, 0
      %p77 = por %p75, %p76
      %p78 = scmp.ne.s32.totalorder %s66, %s67
      %p79 = scmp.eq.s32.totalorder %s15, 1
      %p80 = por %p78, %p79
      %p82 = scmp.ne.s32.totalorder %s67, %s81
      %p83 = scmp.eq.s32.totalorder %s15, 0
      %p84 = por %p82, %p83
      %s85 = ssub.s32 %s9, %s16
      %p86 = scmp.eq.s32.totalorder %s85, 0
      %s88 = sadd.s32 %s87, 1
      %s89 = scalar_select %p86, %s87, %s88
      %p92 = pneg %p86
      %p93 = scmp.eq.s32.totalorder %s9, 1
      %p94 = por %p92, %p93
      %p95 = scmp.ne.s32.totalorder %s87, %s90
      %p96 = scmp.eq.s32.totalorder %s9, 0
      %p97 = por %p95, %p96
      %p98 = scmp.ne.s32.totalorder %s87, %s90
      %p99 = scmp.eq.s32.totalorder %s14, 1
      %p100 = por %p98, %p99
      %p101 = scmp.ne.s32.totalorder %s90, %s91
      %p102 = scmp.eq.s32.totalorder %s14, 0
      %p103 = por %p101, %p102
      %p104 = scmp.ne.s32.totalorder %s90, %s91
      %p105 = scmp.eq.s32.totalorder %s15, 1
      %p106 = por %p104, %p105
      %p108 = scmp.ne.s32.totalorder %s91, %s107
      %p109 = scmp.eq.s32.totalorder %s15, 0
      %p110 = por %p108, %p109
      %p111 = scmp.le.s32.totalorder 1, %s9
      %p112 = scmp.lt.s32.totalorder %s9, 3
      %p113 = pnand %p111, %p112
      %p114 = pneg %p113
      // Predicated region
      $region9: #{tpu_custom_call.1} parent=5 // pred_check
        _
      $region10: #{tpu_custom_call.1} parent=5 // pred_check_branch
        %116 = sbr.rel (%p113) target = $region12
      $region11: #{tpu_custom_call.1} parent=5 // pred_region
        %s117 = ssub.s32 %s9, 1
        // Predicated region
        $region13: #{tpu_custom_call.1} parent=11 // pred_check
          %p118 = pneg %p56
        $region14: #{tpu_custom_call.1} parent=11 // pred_check_branch
          %120 = sbr.rel (%p118) target = $region16
        $region15: #{tpu_custom_call.1} parent=11 // pred_region
          _
        $region16: #{tpu_custom_call.1} parent=11 // pred_fallthru
          _
        // Predicated region
        $region17: #{tpu_custom_call.1} parent=11 // pred_check
          %p121 = pneg %p77
        $region18: #{tpu_custom_call.1} parent=11 // pred_check_branch
          %123 = sbr.rel (%p121) target = $region20
        $region19: #{tpu_custom_call.1} parent=11 // pred_region
          _
        $region20: #{tpu_custom_call.1} parent=11 // pred_fallthru
          _
      $region12: #{tpu_custom_call.1} parent=5 // pred_fallthru
        _
      %p124 = scmp.lt.s32.totalorder %s9, 2
      // Predicated region
      $region21: #{tpu_custom_call.1} parent=5 // pred_check
        %p125 = pneg %p124
      $region22: #{tpu_custom_call.1} parent=5 // pred_check_branch
        %127 = sbr.rel (%p125) target = $region24
      $region23: #{tpu_custom_call.1} parent=5 // pred_region
        // Predicated region
        $region25: #{tpu_custom_call.1} parent=23 // pred_check
          %p128 = pneg %p29
        $region26: #{tpu_custom_call.1} parent=23 // pred_check_branch
          %130 = sbr.rel (%p128) target = $region28
        $region27: #{tpu_custom_call.1} parent=23 // pred_region
          %s131 = smul.u32 8, %s9
          %s132 = ssub.s32 13, %s131
          %p133 = scmp.lt.s32.totalorder %s132, 8
          %s134 = scalar_select %p133, %s132, 8
          %s135 = smul.u32 64, %s134
          %p136 = scmp.lt.s32.totalorder %s131, 12
          %s137 = scalar_select %p136, %s131, 12
          %s138 = smul.addr %s137, 4
          %s139 = scalar_lea.vmem %s0, %s138
          %s140 = smul.u32 8, %s9
          %s141 = ssub.s32 13, %s140
          %p142 = scmp.lt.s32.totalorder %s141, 8
          %s143 = scalar_select %p142, %s141, 8
          %s144 = smul.u32 64, %s143
        $region28: #{tpu_custom_call.1} parent=23 // pred_fallthru
          _
      $region24: #{tpu_custom_call.1} parent=5 // pred_fallthru
        _
      %p145 = scmp.le.s32.totalorder 1, %s9
      %p146 = scmp.lt.s32.totalorder %s9, 3
      %p147 = pnand %p145, %p146
      %p148 = pneg %p147
      // Predicated region
      $region29: #{tpu_custom_call.1} parent=5 // pred_check
        _
      $region30: #{tpu_custom_call.1} parent=5 // pred_check_branch
        %150 = sbr.rel (%p147) target = $region32
      $region31: #{tpu_custom_call.1} parent=5 // pred_region
        %s151 = ssub.s32 %s9, 1
        %s152 = smul.u32 8, %s14
        %s153 = ssub.s32 13, %s152
        %p154 = scmp.lt.s32.totalorder %s153, 8
        %s155 = scalar_select %p154, %s153, 8
        %s156 = smul.u32 64, %s155
        %p157 = scmp.lt.s32.totalorder %s152, 12
        %s158 = scalar_select %p157, %s152, 12
        %s159 = smul.addr %s158, 4
        %s160 = scalar_lea.vmem %s0, %s159
        %p161 = pneg %p35
        %p162 = pneg %p32
        %p163 = pneg %p56
        %p164 = pneg %p53
        %p165 = pneg %p77
        %p166 = pneg %p74
        %p167 = pneg %p103
        %p168 = pneg %p100
        %s169 = sand.u32 %s90, 1
        %s170 = sand.u32 %s90, 1
        %s171 = smul.addr %s170, 64
        %s172 = scalar_lea.vmem [#allocation2], %s171
        %s173 = smul.u32 8, %s14
        %s174 = ssub.s32 13, %s173
        %p175 = scmp.lt.s32.totalorder %s174, 8
        %s176 = scalar_select %p175, %s174, 8
        %s177 = smul.u32 64, %s176
        %p178 = scmp.lt.s32.totalorder %s173, 12
        %s179 = scalar_select %p178, %s173, 12
        %s180 = smul.addr %s179, 4
        %s181 = scalar_lea.vmem %s0, %s180
        %s182 = smul.u32 8, %s14
        %s183 = ssub.s32 13, %s182
        %p184 = scmp.lt.s32.totalorder %s183, 8
        %s185 = scalar_select %p184, %s183, 8
        %s186 = smul.u32 64, %s185
        %s187 = smul.u32 8, %s14
        %s188 = ssub.s32 13, %s187
        %p189 = scmp.lt.s32.totalorder %s188, 8
        %s190 = scalar_select %p189, %s188, 8
        %s191 = smul.u32 128, %s190
        %v193 = vld [vmem:[%s181] sm:$0xf]
        %v194 = vld [vmem:[%s181 + $0x4] sm:$0xf]
        %v195 = vld [vmem:[%s181 + $0x8] sm:$0xf]
        %v196 = vld [vmem:[%s181 + $0xc] sm:$0xf]
        %v197 = vld [vmem:[%s181 + $0x10] sm:$0xf]
        %v198 = vld [vmem:[%s181 + $0x14] sm:$0xf]
        %v199 = vld [vmem:[%s181 + $0x18] sm:$0xf]
        %v200 = vld [vmem:[%s181 + $0x1c] sm:$0xf]
        %v201 = vld [vmem:[%s1] sm:$0xf]
        %v202 = vld [vmem:[%s1 + $0x4] sm:$0xf]
        %v203 = vld [vmem:[%s1 + $0x8] sm:$0xf]
        %v204 = vld [vmem:[%s1 + $0xc] sm:$0xf]
        %v205 = vld [vmem:[%s1 + $0x10] sm:$0xf]
        %v206 = vld [vmem:[%s1 + $0x14] sm:$0xf]
        %v207 = vld [vmem:[%s2] sm:$0x1]
        %v209 = vlaneseq
        %v210 = vshrl.u32 %v209, 7
        %v211 = vsub.s32 0, %v210
        %v212 = vrot.slane %v207, %v211
        %v222 = vunpack.c.l.b16 %v193
        %v223 = vunpack.c.l.b16 %v194
        %v224 = vunpack.c.l.b16 %v195
        %v225 = vunpack.c.l.b16 %v196
        %v226 = vunpack.c.l.b16 %v197
        %v227 = vunpack.c.l.b16 %v198
        %v228 = vunpack.c.l.b16 %v199
        %v229 = vunpack.c.l.b16 %v200
        %v230 = vpack.c.b16 %v223, %v222
        %v231 = vpack.c.b16 %v225, %v224
        %v232 = vpack.c.b16 %v227, %v226
        %v233 = vpack.c.b16 %v229, %v228
        %v240 = vunpack.c.l.b16 %v201
        %v241 = vunpack.c.l.b16 %v202
        %v242 = vunpack.c.l.b16 %v203
        %v243 = vunpack.c.l.b16 %v204
        %v244 = vunpack.c.l.b16 %v205
        %v245 = vunpack.c.l.b16 %v206
        %v246 = vpack.c.b16 %v241, %v240
        %v247 = vpack.c.b16 %v243, %v242
        %v248 = vpack.c.b16 %v245, %v244
        %vm252 = vcmask 392192
        %v254 = vsel %vm252, %v230, 0
        %v257 = vsel %vm252, %v231, 0
        %v260 = vsel %vm252, %v232, 0
        %v263 = vsel %vm252, %v233, 0
        %265 = vmatprep.subr.bf16.mxu0 0
        %266 = vmatpush1.bf16.msra.mxu0 0
        %267 = vmatprep.subr.bf16.mxu0 0
        %268 = vmatpush1.bf16.msra.mxu0 0
        %269 = vmatprep.subr.bf16.mxu0 0
        %270 = vmatpush1.bf16.msra.mxu0 0
        %271 = vmatprep.subr.bf16.mxu0 0
        %272 = vmatpush1.bf16.msra.mxu0 0
        %273 = vmatprep.subr.bf16.mxu0 0
        %274 = vmatpush1.bf16.msra.mxu0 0
        %275 = vmatprep.subr.bf16.mxu0 0
        %276 = vmatpush1.bf16.msra.mxu0 %v248
        %277 = vmatprep.subr.bf16.mxu0 0
        %278 = vmatpush1.bf16.msra.mxu0 %v247
        %279 = vmatprep.subr.bf16.mxu0 0
        %280 = vmatpush1.bf16.msra.mxu0 %v246
        %281 = vmatprep.subr.bf16.mxu0 0
        %282 = vmatpush2.bf16.msra.mxu0 0
        %283 = vmatprep.subr.bf16.mxu0 0
        %284 = vmatpush2.bf16.msra.mxu0 0
        %285 = vmatprep.subr.bf16.mxu0 0
        %286 = vmatpush2.bf16.msra.mxu0 0
        %287 = vmatprep.subr.bf16.mxu0 0
        %288 = vmatpush2.bf16.msra.mxu0 0
        %289 = vmatprep.subr.bf16.mxu0 0
        %290 = vmatpush2.bf16.msra.mxu0 0
        %291 = vmatprep.subr.bf16.mxu0 0
        %292 = vmatpush2.bf16.msra.mxu0 0
        %293 = vmatprep.subr.bf16.mxu0 0
        %294 = vmatpush2.bf16.msra.mxu0 0
        %295 = vmatprep.subr.bf16.mxu0 0
        %296 = vmatpush2.bf16.msra.mxu0 0
        %297 = vmatprep.mubr.bf16.mxu0 0
        %298 = vmatmul.mubr.bf16.gmra.mxu0 %v254
        %v299 = vpop.f32.mrf.mxu0
        %v300 = vadd.f32 %v212, %v299
        %v301 = vpop.f32.mrf.mxu0
        %v302 = vpop.f32.mrf.mxu0
        %v303 = vadd.f32 %v212, %v302
        %v304 = vpop.f32.mrf.mxu0
        %305 = vmatprep.mubr.bf16.mxu0 0
        %306 = vmatmul.mubr.bf16.gmra.mxu0 %v257
        %v307 = vpop.f32.mrf.mxu0
        %v308 = vadd.f32 %v212, %v307
        %v309 = vpop.f32.mrf.mxu0
        %v310 = vpop.f32.mrf.mxu0
        %v311 = vadd.f32 %v212, %v310
        %v312 = vpop.f32.mrf.mxu0
        %313 = vmatprep.mubr.bf16.mxu0 0
        %314 = vmatmul.mubr.bf16.gmra.mxu0 %v260
        %v315 = vpop.f32.mrf.mxu0
        %v316 = vadd.f32 %v212, %v315
        %v317 = vpop.f32.mrf.mxu0
        %v318 = vpop.f32.mrf.mxu0
        %v319 = vadd.f32 %v212, %v318
        %v320 = vpop.f32.mrf.mxu0
        %321 = vmatprep.mubr.bf16.mxu0 0
        %322 = vmatmul.mubr.bf16.gmra.mxu0 %v263
        %v323 = vpop.f32.mrf.mxu0
        %v324 = vadd.f32 %v212, %v323
        %v325 = vpop.f32.mrf.mxu0
        %v326 = vpop.f32.mrf.mxu0
        %v327 = vadd.f32 %v212, %v326
        %v328 = vpop.f32.mrf.mxu0
        %329 = vdwg.mxu0
        %v330 = vmax.f32 %v300, 0.0
        %v331 = vmax.f32 %v303, 0.0
        %v332 = vmax.f32 %v308, 0.0
        %v333 = vmax.f32 %v311, 0.0
        %v334 = vmax.f32 %v316, 0.0
        %v335 = vmax.f32 %v319, 0.0
        %v336 = vmax.f32 %v324, 0.0
        %v337 = vmax.f32 %v327, 0.0
        %vm338 = vcmask 588800
        %339 = vst.msk [vmem:[%s172] sm:$0xff] %vm338, %v330
        %340 = vst.msk [vmem:[%s172 + $0x8] sm:$0xff] %vm338, %v331
        %341 = vst.msk [vmem:[%s172 + $0x10] sm:$0xff] %vm338, %v332
        %342 = vst.msk [vmem:[%s172 + $0x18] sm:$0xff] %vm338, %v333
        %343 = vst.msk [vmem:[%s172 + $0x20] sm:$0xff] %vm338, %v334
        %344 = vst.msk [vmem:[%s172 + $0x28] sm:$0xff] %vm338, %v335
        %345 = vst.msk [vmem:[%s172 + $0x30] sm:$0xff] %vm338, %v336
        %346 = vst.msk [vmem:[%s172 + $0x38] sm:$0xff] %vm338, %v337
        %s347 = sand.u32 %s90, 1
        %s348 = sand.u32 %s90, 1
        %s349 = smul.addr %s348, 64
        %s350 = scalar_lea.vmem [#allocation2], %s349
        // Predicated region
        $region33: #{tpu_custom_call.1} parent=31 // pred_check
          %p351 = pneg %p100
        $region34: #{tpu_custom_call.1} parent=31 // pred_check_branch
          %353 = sbr.rel (%p351) target = $region36
        $region35: #{tpu_custom_call.1} parent=31 // pred_region
          %s354 = smul.u32 8, %s14
          %s355 = ssub.s32 13, %s354
          %p356 = scmp.lt.s32.totalorder %s355, 8
          %s357 = scalar_select %p356, %s355, 8
          %s358 = smul.u32 128, %s357
          %p359 = scmp.ne.s32.totalorder 0, %s358
          %s360 = smul.addr %s354, 8
          %s361 = scalar_lea.vmem %s3, %s360
          // Predicated region
          $region37: #{tpu_custom_call.1} parent=35 // pred_check
            %p362 = pneg %p359
          $region38: #{tpu_custom_call.1} parent=35 // pred_check_branch
            %364 = sbr.rel (%p362) target = $region40
          $region39: #{tpu_custom_call.1} parent=35 // pred_region
            // Predicated region
            $region41: #{tpu_custom_call.1} parent=39 // pred_check
              _
            $region42: #{tpu_custom_call.1} parent=39 // pred_check_branch
              %366 = sbr.rel (0) target = $region44
            $region43: #{tpu_custom_call.1} parent=39 // pred_region
              // Predicated region
              $region63: #{tpu_custom_call.1} parent=43 // pred_check
                _
              $region64: #{tpu_custom_call.1} parent=43 // pred_check_branch
                %430 = sbr.rel (0) target = $region66
              $region65: #{tpu_custom_call.1} parent=43 // pred_region
                %s431 = sshrl.u32 %s357, 3
                // While loop
                $region67: #{tpu_custom_call.1} parent=65 // loop_pre_header
                  _
                $region68: #{tpu_custom_call.1} parent=65 // loop_header
                  %s433 = sphi 0, %s435
                  %p434 = scmp.ge.s32.totalorder %s433, %s431
                  %s438 = sphi 0, %s459
                  %s439 = sphi %s350, %s462
                  %s440 = sphi %s361, %s463
                $region69: #{tpu_custom_call.1} parent=65 // loop_header_branch
                  %437 = sbr.rel (%p434) target = $region73
                $region70: #{tpu_custom_call.1} parent=65 // loop_body
                  %v441 = vld [vmem:[%s439] sm:$0xff]
                  %442 = vst [vmem:[%s440] sm:$0xff] %v441
                  %v443 = vld [vmem:[%s439 + $0x8] sm:$0xff]
                  %444 = vst [vmem:[%s440 + $0x8] sm:$0xff] %v443
                  %v445 = vld [vmem:[%s439 + $0x10] sm:$0xff]
                  %446 = vst [vmem:[%s440 + $0x10] sm:$0xff] %v445
                  %v447 = vld [vmem:[%s439 + $0x18] sm:$0xff]
                  %448 = vst [vmem:[%s440 + $0x18] sm:$0xff] %v447
                  %v449 = vld [vmem:[%s439 + $0x20] sm:$0xff]
                  %450 = vst [vmem:[%s440 + $0x20] sm:$0xff] %v449
                  %v451 = vld [vmem:[%s439 + $0x28] sm:$0xff]
                  %452 = vst [vmem:[%s440 + $0x28] sm:$0xff] %v451
                  %v453 = vld [vmem:[%s439 + $0x30] sm:$0xff]
                  %454 = vst [vmem:[%s440 + $0x30] sm:$0xff] %v453
                  %v455 = vld [vmem:[%s439 + $0x38] sm:$0xff]
                  %456 = vst [vmem:[%s440 + $0x38] sm:$0xff] %v455
                  %s457 = sadd.s32 1, %s438
                  %p458 = scmp.ge.s32.totalorder %s457, %s431
                  %s459 = scalar_select %p458, 0, %s457
                  %s460 = smul.u32 %s459, 64
                  %s461 = smul.u32 %s459, 64
                  %s462 = scalar_lea.vmem %s350, %s460 [#allocation2]
                  %s463 = scalar_lea.vmem %s361, %s461
                $region71: #{tpu_custom_call.1} parent=65 // loop_footer
                  %s435 = sadd.s32 %s433, 1
                $region72: #{tpu_custom_call.1} parent=65 // loop_footer_branch
                  %432 = sbr.rel target = $region68
                $region73: #{tpu_custom_call.1} parent=65 // loop_exit
                  _
                %s464 = sshrl.u32 %s357, 3
                %s465 = sand.u32 %s357, 7
                %s466 = smul.u32 %s464, 8
                %s467 = smul.u32 8, %s466
                %s468 = scalar_lea.vmem %s350, %s467 [#allocation2]
                %s469 = smul.u32 8, %s466
                %s470 = scalar_lea.vmem %s361, %s469
                // While loop
                $region74: #{tpu_custom_call.1} parent=65 // loop_pre_header
                  _
                $region75: #{tpu_custom_call.1} parent=65 // loop_header
                  %s472 = sphi 0, %s474
                  %p473 = scmp.ge.s32.totalorder %s472, %s465
                  %s477 = sphi 0, %s484
                  %s478 = sphi %s468, %s487
                  %s479 = sphi %s470, %s488
                $region76: #{tpu_custom_call.1} parent=65 // loop_header_branch
                  %476 = sbr.rel (%p473) target = $region80
                $region77: #{tpu_custom_call.1} parent=65 // loop_body
                  %v480 = vld [vmem:[%s478] sm:$0xff]
                  %481 = vst [vmem:[%s479] sm:$0xff] %v480
                  %s482 = sadd.s32 1, %s477
                  %p483 = scmp.ge.s32.totalorder %s482, %s465
                  %s484 = scalar_select %p483, 0, %s482
                  %s485 = smul.u32 %s484, 8
                  %s486 = smul.u32 %s484, 8
                  %s487 = scalar_lea.vmem %s468, %s485 [#allocation2]
                  %s488 = scalar_lea.vmem %s470, %s486
                $region78: #{tpu_custom_call.1} parent=65 // loop_footer
                  %s474 = sadd.s32 %s472, 1
                $region79: #{tpu_custom_call.1} parent=65 // loop_footer_branch
                  %471 = sbr.rel target = $region75
                $region80: #{tpu_custom_call.1} parent=65 // loop_exit
                  _
              $region66: #{tpu_custom_call.1} parent=43 // pred_fallthru
                _
              // Predicated region
              $region81: #{tpu_custom_call.1} parent=43 // pred_check
                _
              $region82: #{tpu_custom_call.1} parent=43 // pred_check_branch
                %490 = sbr.rel target = $region84
              $region83: #{tpu_custom_call.1} parent=43 // pred_region
                _
              $region84: #{tpu_custom_call.1} parent=43 // pred_fallthru
                _
            $region44: #{tpu_custom_call.1} parent=39 // pred_fallthru
              _
            // Predicated region
            $region45: #{tpu_custom_call.1} parent=39 // pred_check
              _
            $region46: #{tpu_custom_call.1} parent=39 // pred_check_branch
              %368 = sbr.rel target = $region48
            $region47: #{tpu_custom_call.1} parent=39 // pred_region
              %s370 = ssub.s32 256, 1
              %s371 = sshrl.u32 %s357, 3
              // While loop
              $region49: #{tpu_custom_call.1} parent=47 // loop_pre_header
                _
              $region50: #{tpu_custom_call.1} parent=47 // loop_header
                %s373 = sphi 0, %s375
                %p374 = scmp.ge.s32.totalorder %s373, %s371
                %s378 = sphi 0, %s399
                %s379 = sphi %s350, %s402
                %s380 = sphi %s361, %s403
              $region51: #{tpu_custom_call.1} parent=47 // loop_header_branch
                %377 = sbr.rel (%p374) target = $region55
              $region52: #{tpu_custom_call.1} parent=47 // loop_body
                %v381 = vld [vmem:[%s379] sm:%s370]
                %382 = vst [vmem:[%s380] sm:%s370] %v381
                %v383 = vld [vmem:[%s379 + $0x8] sm:%s370]
                %384 = vst [vmem:[%s380 + $0x8] sm:%s370] %v383
                %v385 = vld [vmem:[%s379 + $0x10] sm:%s370]
                %386 = vst [vmem:[%s380 + $0x10] sm:%s370] %v385
                %v387 = vld [vmem:[%s379 + $0x18] sm:%s370]
                %388 = vst [vmem:[%s380 + $0x18] sm:%s370] %v387
                %v389 = vld [vmem:[%s379 + $0x20] sm:%s370]
                %390 = vst [vmem:[%s380 + $0x20] sm:%s370] %v389
                %v391 = vld [vmem:[%s379 + $0x28] sm:%s370]
                %392 = vst [vmem:[%s380 + $0x28] sm:%s370] %v391
                %v393 = vld [vmem:[%s379 + $0x30] sm:%s370]
                %394 = vst [vmem:[%s380 + $0x30] sm:%s370] %v393
                %v395 = vld [vmem:[%s379 + $0x38] sm:%s370]
                %396 = vst [vmem:[%s380 + $0x38] sm:%s370] %v395
                %s397 = sadd.s32 1, %s378
                %p398 = scmp.ge.s32.totalorder %s397, %s371
                %s399 = scalar_select %p398, 0, %s397
                %s400 = smul.u32 %s399, 64
                %s401 = smul.u32 %s399, 64
                %s402 = scalar_lea.vmem %s350, %s400 [#allocation2]
                %s403 = scalar_lea.vmem %s361, %s401
              $region53: #{tpu_custom_call.1} parent=47 // loop_footer
                %s375 = sadd.s32 %s373, 1
              $region54: #{tpu_custom_call.1} parent=47 // loop_footer_branch
                %372 = sbr.rel target = $region50
              $region55: #{tpu_custom_call.1} parent=47 // loop_exit
                _
              %s404 = sshrl.u32 %s357, 3
              %s405 = sand.u32 %s357, 7
              %s406 = smul.u32 %s404, 8
              %s407 = smul.u32 8, %s406
              %s408 = scalar_lea.vmem %s350, %s407 [#allocation2]
              %s409 = smul.u32 8, %s406
              %s410 = scalar_lea.vmem %s361, %s409
              // While loop
              $region56: #{tpu_custom_call.1} parent=47 // loop_pre_header
                _
              $region57: #{tpu_custom_call.1} parent=47 // loop_header
                %s412 = sphi 0, %s414
                %p413 = scmp.ge.s32.totalorder %s412, %s405
                %s417 = sphi 0, %s424
                %s418 = sphi %s408, %s427
                %s419 = sphi %s410, %s428
              $region58: #{tpu_custom_call.1} parent=47 // loop_header_branch
                %416 = sbr.rel (%p413) target = $region62
              $region59: #{tpu_custom_call.1} parent=47 // loop_body
                %v420 = vld [vmem:[%s418] sm:%s370]
                %421 = vst [vmem:[%s419] sm:%s370] %v420
                %s422 = sadd.s32 1, %s417
                %p423 = scmp.ge.s32.totalorder %s422, %s405
                %s424 = scalar_select %p423, 0, %s422
                %s425 = smul.u32 %s424, 8
                %s426 = smul.u32 %s424, 8
                %s427 = scalar_lea.vmem %s408, %s425 [#allocation2]
                %s428 = scalar_lea.vmem %s410, %s426
              $region60: #{tpu_custom_call.1} parent=47 // loop_footer
                %s414 = sadd.s32 %s412, 1
              $region61: #{tpu_custom_call.1} parent=47 // loop_footer_branch
                %411 = sbr.rel target = $region57
              $region62: #{tpu_custom_call.1} parent=47 // loop_exit
                _
            $region48: #{tpu_custom_call.1} parent=39 // pred_fallthru
              _
          $region40: #{tpu_custom_call.1} parent=35 // pred_fallthru
            _
          %491 = vnop
        $region36: #{tpu_custom_call.1} parent=31 // pred_fallthru
          _
      $region32: #{tpu_custom_call.1} parent=5 // pred_fallthru
        _
      %p492 = scmp.le.s32.totalorder 2, %s9
      // Predicated region
      $region85: #{tpu_custom_call.1} parent=5 // pred_check
        %p493 = pneg %p492
      $region86: #{tpu_custom_call.1} parent=5 // pred_check_branch
        %495 = sbr.rel (%p493) target = $region88
      $region87: #{tpu_custom_call.1} parent=5 // pred_region
        %s496 = ssub.s32 %s9, 2
        // Predicated region
        $region89: #{tpu_custom_call.1} parent=87 // pred_check
          %p497 = pneg %p106
        $region90: #{tpu_custom_call.1} parent=87 // pred_check_branch
          %499 = sbr.rel (%p497) target = $region92
        $region91: #{tpu_custom_call.1} parent=87 // pred_region
          %s500 = sand.u32 %s91, 1
          %s501 = sand.u32 %s91, 1
          %s502 = smul.addr %s501, 64
          %s503 = scalar_lea.vmem [#allocation2], %s502
        $region92: #{tpu_custom_call.1} parent=87 // pred_fallthru
          _
      $region88: #{tpu_custom_call.1} parent=5 // pred_fallthru
        _
    $region6: #{tpu_custom_call.1} parent=1 // loop_footer
      %s13 = sadd.s32 1, %s9
    $region7: #{tpu_custom_call.1} parent=1 // loop_footer_branch
      %8 = sbr.rel target = $region3
    $region8: #{tpu_custom_call.1} parent=1 // loop_exit
      _

</llo_original>
